<compile_context>
chip_gen: v7x
topology: tpu7x:2x2x1
jax: 0.10.0
libtpu: 0.0.40
codegen_flags: <defaults>
</compile_context>

<pallas_src>
import numpy as np
import jax
import jax.numpy as jnp
from jax.experimental import pallas as pl
from jax.experimental.pallas import tpu as pltpu


def decoder_kernel(oa_ref, z_ref, dt_ref,
                   w_oa_ref, b_oa_ref, w_z_ref, b_z_ref,
                   w1a_ref, w1b_ref, tbl_ref, b1_ref,
                   w2_ref, b2_ref,
                   out_ref):
    f32 = jnp.float32
    wdt = w1a_ref.dtype   # MXU operand / HBM stream dtype (f32 or bf16)

    # obs_act / z encoders: MXU dot (f32 accumulate), bias + relu in f32 on VPU.
    e1 = jnp.dot(oa_ref[...], w_oa_ref[...], preferred_element_type=f32) + b_oa_ref[...]
    e2 = jnp.dot(z_ref[...], w_z_ref[...], preferred_element_type=f32) + b_z_ref[...]
    r1 = jnp.maximum(e1, 0.0).astype(wdt)
    r2 = jnp.maximum(e2, 0.0).astype(wdt)

    # time path: relu(emb[dt]) @ w1[2E:] == onehot(dt) @ tbl, with tbl
    # precomputed once in prepare_decoder_params.  onehot built on the VPU,
    # no HBM traffic.  NOTE: out-of-range delta_t gives an all-zero row
    # (reference's Embedding gather is undefined/clamped there anyway).
    tb, num_t = dt_ref.shape[0], tbl_ref.shape[0]
    iota = jax.lax.broadcasted_iota(jnp.int32, (tb, num_t), 1)
    onehot = (dt_ref[...] == iota).astype(wdt)            # (tb, num_t), {0,1}

    # unify layer 1: three small MXU dots (K<=E), bias add + relu in f32.
    h = (jnp.dot(r1, w1a_ref[...], preferred_element_type=f32)
         + jnp.dot(r2, w1b_ref[...], preferred_element_type=f32)
         + jnp.dot(onehot, tbl_ref[...], preferred_element_type=f32)
         + b1_ref[...])
    h = jnp.maximum(h, 0.0).astype(wdt)

    # unify layer 2: un-padded (tb, out_dim) store (last block dim == full dim).
    out_ref[...] = (jnp.dot(h, w2_ref[...], preferred_element_type=f32)
                    + b2_ref[...]).astype(out_ref.dtype)


def _round_up(x, m):
    return ((x + m - 1) // m) * m


def _pick_tile(B, tile_b=None):
    if tile_b is not None:
        return max(8, _round_up(tile_b, 8))
    # Big tile to amortize the ~0.35us per-grid-step cost; far under scoped VMEM
    # at these widths even double-buffered.
    tb = min(4096, _round_up(B, 8))
    # v7x has 2 TensorCores per chip: keep >=2 "parallel" grid steps when the
    # batch allows so both cores get work (harmless on 1-TC v5e/v6e).
    if B > 8 and pl.cdiv(B, tb) < 2:
        tb = max(8, _round_up(pl.cdiv(B, 2), 8))
    return tb


def prepare_decoder_params(params, *, stream_dtype=jnp.float32):
    """Fuse / cast parameters ONCE; reuse the returned dict across forward calls.

    stream_dtype: dtype of HBM-resident matmul weights (and batch inputs) —
    jnp.bfloat16 halves HBM read bytes on v5e/v6e/v7x; accumulation stays f32
    inside the kernel (preferred_element_type) and biases stay f32.
    """
    f32 = jnp.float32
    E = params["w_oa"].shape[1]
    w1 = params["w1"].astype(f32)
    emb = params["emb"].astype(f32)
    # time path folded: relu(emb[dt]) @ w1[2E:] == onehot(dt) @ (relu(emb) @ w1[2E:])
    tbl = jnp.maximum(emb, 0.0) @ w1[2 * E:, :]
    return dict(
        w_oa=params["w_oa"].astype(stream_dtype),
        b_oa=params["b_oa"].reshape(1, -1).astype(f32),
        w_z=params["w_z"].astype(stream_dtype),
        b_z=params["b_z"].reshape(1, -1).astype(f32),
        w1a=w1[:E, :].astype(stream_dtype),
        w1b=w1[E:2 * E, :].astype(stream_dtype),
        tbl=tbl.astype(stream_dtype),
        b1=params["b1"].reshape(1, -1).astype(f32),
        w2=params["w2"].astype(stream_dtype),
        b2=params["b2"].reshape(1, -1).astype(f32),
    )


def decoder_forward(obs_act, z, delta_t, fused, *, tile_b=None):
    """obs_act: (B, obs+act), z: (B, z_dim), delta_t: (B,) int.
    `fused` must come from prepare_decoder_params (built once, cached)."""
    f32 = jnp.float32
    B, oa_dim = obs_act.shape
    z_dim = z.shape[1]
    E = fused["w_oa"].shape[1]
    H = fused["w1a"].shape[1]
    num_t = fused["tbl"].shape[0]
    out_dim = fused["w2"].shape[1]
    sdt = fused["w_oa"].dtype            # HBM stream dtype (f32 or bf16)

    tb = _pick_tile(B, tile_b)
    steps = pl.cdiv(B, tb)
    Bp = steps * tb

    oa = obs_act.astype(sdt)
    zz = z.astype(sdt)
    dt = delta_t.astype(jnp.int32).reshape(B, 1)
    if Bp != B:  # ragged batch: zero-pad rows; padded results sliced off below
        pad = ((0, Bp - B), (0, 0))
        oa = jnp.pad(oa, pad)
        zz = jnp.pad(zz, pad)
        dt = jnp.pad(dt, pad)

    # constant index_maps keep all weights/biases resident in VMEM across the grid
    full = lambda shape: pl.BlockSpec(shape, lambda i: (0, 0))

    out = pl.pallas_call(
        decoder_kernel,
        out_shape=jax.ShapeDtypeStruct((Bp, out_dim), f32),
        grid=(steps,),
        in_specs=[
            pl.BlockSpec((tb, oa_dim), lambda i: (i, 0)),   # obs_act (batch-tiled)
            pl.BlockSpec((tb, z_dim), lambda i: (i, 0)),    # z       (batch-tiled)
            pl.BlockSpec((tb, 1), lambda i: (i, 0)),        # delta_t (batch-tiled, int32)
            full((oa_dim, E)), full((1, E)),                # obs_act encoder W/b
            full((z_dim, E)), full((1, E)),                 # z encoder W/b
            full((E, H)), full((E, H)),                     # unify L1 weight blocks
            full((num_t, H)), full((1, H)),                 # time table + b1
            full((H, out_dim)), full((1, out_dim)),         # unify L2 (un-padded)
        ],
        out_specs=pl.BlockSpec((tb, out_dim), lambda i: (i, 0)),
        compiler_params=pltpu.CompilerParams(
            dimension_semantics=("parallel",)),
    )(oa, zz, dt,
      fused["w_oa"], fused["b_oa"], fused["w_z"], fused["b_z"],
      fused["w1a"], fused["w1b"], fused["tbl"], fused["b1"],
      fused["w2"], fused["b2"])

    return out[:B] if Bp != B else out


def reference_forward(obs_act, z, delta_t, p):
    e1 = obs_act @ p["w_oa"] + p["b_oa"]
    e2 = z @ p["w_z"] + p["b_z"]
    e3 = p["emb"][delta_t]
    h = jax.nn.relu(jnp.concatenate([e1, e2, e3], axis=-1))
    h = jax.nn.relu(h @ p["w1"] + p["b1"])
    return h @ p["w2"] + p["b2"]


if __name__ == "__main__":
    # Small, Decoder-consistent shapes.
    z_dim, obs_dim, action_dim = 16, 11, 5
    num_time_delta, embed_dim = 16, 32
    hidden = 64                     # MLP hidden_dims=[64]
    oa_dim = obs_dim + action_dim   # 16
    out_dim = oa_dim
    B = 8

    key = jax.random.PRNGKey(0)
    ks = jax.random.split(key, 12)
    s = 0.1
    params = {
        "w_oa": s * jax.random.normal(ks[0], (oa_dim, embed_dim), jnp.float32),
        "b_oa": s * jax.random.normal(ks[1], (1, embed_dim), jnp.float32),
        "w_z":  s * jax.random.normal(ks[2], (z_dim, embed_dim), jnp.float32),
        "b_z":  s * jax.random.normal(ks[3], (1, embed_dim), jnp.float32),
        "emb":  s * jax.random.normal(ks[4], (num_time_delta, embed_dim), jnp.float32),
        "w1":   s * jax.random.normal(ks[5], (3 * embed_dim, hidden), jnp.float32),
        "b1":   s * jax.random.normal(ks[6], (1, hidden), jnp.float32),
        "w2":   s * jax.random.normal(ks[7], (hidden, out_dim), jnp.float32),
        "b2":   s * jax.random.normal(ks[8], (1, out_dim), jnp.float32),
    }

    obs_act = jax.random.normal(ks[9], (B, oa_dim), jnp.float32)
    z = jax.random.normal(ks[10], (B, z_dim), jnp.float32)
    delta_t = jax.random.randint(ks[11], (B,), 0, num_time_delta, jnp.int32)

    ref = reference_forward(obs_act, z, delta_t, params)

    # ---- f32 streams: exact path, tight tolerance ----
    fused_f32 = prepare_decoder_params(params)            # build once, reuse
    out = jax.block_until_ready(decoder_forward(obs_act, z, delta_t, fused_f32))
    assert out.shape == (B, out_dim)
    assert np.allclose(np.asarray(out), np.asarray(ref), atol=1e-5, rtol=1e-5)

    # ---- ragged batch: exercises cdiv grid + zero-pad edge handling ----
    Br = 12
    oa_r = jax.random.normal(ks[9], (Br, oa_dim), jnp.float32)
    z_r = jax.random.normal(ks[10], (Br, z_dim), jnp.float32)
    dt_r = jax.random.randint(ks[11], (Br,), 0, num_time_delta, jnp.int32)
    out_r = jax.block_until_ready(decoder_forward(oa_r, z_r, dt_r, fused_f32))
    ref_r = reference_forward(oa_r, z_r, dt_r, params)
    assert out_r.shape == (Br, out_dim)
    assert np.allclose(np.asarray(out_r), np.asarray(ref_r), atol=1e-5, rtol=1e-5)

    # ---- bf16 HBM streams (halved read bytes), f32 accumulation: loose check ----
    fused_bf16 = prepare_decoder_params(params, stream_dtype=jnp.bfloat16)
    out_bf = jax.block_until_ready(decoder_forward(obs_act, z, delta_t, fused_bf16))
    assert out_bf.shape == (B, out_dim)
    assert np.allclose(np.asarray(out_bf), np.asarray(ref), atol=5e-2, rtol=5e-2)

    print("KERNEL_OK")
</pallas_src>

<mosaic_0001>
module attributes {stable_mosaic.version = 11 : i64} {
  func.func @decoder_kernel(%arg0: i32, %arg1: memref<8x16xf32, #tpu.memory_space<vmem>>, %arg2: memref<8x16xf32, #tpu.memory_space<vmem>>, %arg3: memref<8x1xi32, #tpu.memory_space<vmem>>, %arg4: memref<16x32xf32, #tpu.memory_space<vmem>>, %arg5: memref<1x32xf32, #tpu.memory_space<vmem>>, %arg6: memref<16x32xf32, #tpu.memory_space<vmem>>, %arg7: memref<1x32xf32, #tpu.memory_space<vmem>>, %arg8: memref<32x64xf32, #tpu.memory_space<vmem>>, %arg9: memref<32x64xf32, #tpu.memory_space<vmem>>, %arg10: memref<16x64xf32, #tpu.memory_space<vmem>>, %arg11: memref<1x64xf32, #tpu.memory_space<vmem>>, %arg12: memref<64x16xf32, #tpu.memory_space<vmem>>, %arg13: memref<1x16xf32, #tpu.memory_space<vmem>>, %arg14: memref<8x16xf32, #tpu.memory_space<vmem>>) attributes {dimension_semantics = [#tpu.dimension_semantics<parallel>], iteration_bounds = array<i64: 1>, scalar_prefetch = 0 : i64, scratch_operands = 0 : i64, tpu.core_type = #tpu.core_type<tc>, window_params = [{transform_indices = @transform_0, window_bounds = array<i64: 8, 16>}, {transform_indices = @transform_1, window_bounds = array<i64: 8, 16>}, {transform_indices = @transform_2, window_bounds = array<i64: 8, 1>}, {pipeline_mode = #tpu.pipeline_mode<synchronous>, transform_indices = @transform_3, window_bounds = array<i64: 16, 32>}, {pipeline_mode = #tpu.pipeline_mode<synchronous>, transform_indices = @transform_4, window_bounds = array<i64: 1, 32>}, {pipeline_mode = #tpu.pipeline_mode<synchronous>, transform_indices = @transform_5, window_bounds = array<i64: 16, 32>}, {pipeline_mode = #tpu.pipeline_mode<synchronous>, transform_indices = @transform_6, window_bounds = array<i64: 1, 32>}, {pipeline_mode = #tpu.pipeline_mode<synchronous>, transform_indices = @transform_7, window_bounds = array<i64: 32, 64>}, {pipeline_mode = #tpu.pipeline_mode<synchronous>, transform_indices = @transform_8, window_bounds = array<i64: 32, 64>}, {pipeline_mode = #tpu.pipeline_mode<synchronous>, transform_indices = @transform_9, window_bounds = array<i64: 16, 64>}, {pipeline_mode = #tpu.pipeline_mode<synchronous>, transform_indices = @transform_10, window_bounds = array<i64: 1, 64>}, {pipeline_mode = #tpu.pipeline_mode<synchronous>, transform_indices = @transform_11, window_bounds = array<i64: 64, 16>}, {pipeline_mode = #tpu.pipeline_mode<synchronous>, transform_indices = @transform_12, window_bounds = array<i64: 1, 16>}, {transform_indices = @transform_13, window_bounds = array<i64: 8, 16>}]} {
    %c0 = arith.constant 0 : index
    %c0_0 = arith.constant 0 : index
    %0 = vector.load %arg1[%c0, %c0_0] : memref<8x16xf32, #tpu.memory_space<vmem>>, vector<8x16xf32>
    %c0_1 = arith.constant 0 : index
    %c0_2 = arith.constant 0 : index
    %1 = vector.load %arg4[%c0_1, %c0_2] : memref<16x32xf32, #tpu.memory_space<vmem>>, vector<16x32xf32>
    %cst = arith.constant dense<0.000000e+00> : vector<8x32xf32>
    %2 = tpu.matmul %0, %1, %cst {dimension_numbers = #tpu.dot_dimension_numbers<[1], [0], [0], [1], [0, 0, 1, 1], [], []>} : vector<8x16xf32>, vector<16x32xf32>, vector<8x32xf32> -> vector<8x32xf32>
    %c0_3 = arith.constant 0 : index
    %c0_4 = arith.constant 0 : index
    %3 = vector.load %arg5[%c0_3, %c0_4] : memref<1x32xf32, #tpu.memory_space<vmem>>, vector<1x32xf32>
    %4 = vector.broadcast %3 : vector<1x32xf32> to vector<8x32xf32>
    %5 = arith.addf %2, %4 : vector<8x32xf32>
    %c0_5 = arith.constant 0 : index
    %c0_6 = arith.constant 0 : index
    %6 = vector.load %arg2[%c0_5, %c0_6] : memref<8x16xf32, #tpu.memory_space<vmem>>, vector<8x16xf32>
    %c0_7 = arith.constant 0 : index
    %c0_8 = arith.constant 0 : index
    %7 = vector.load %arg6[%c0_7, %c0_8] : memref<16x32xf32, #tpu.memory_space<vmem>>, vector<16x32xf32>
    %cst_9 = arith.constant dense<0.000000e+00> : vector<8x32xf32>
    %8 = tpu.matmul %6, %7, %cst_9 {dimension_numbers = #tpu.dot_dimension_numbers<[1], [0], [0], [1], [0, 0, 1, 1], [], []>} : vector<8x16xf32>, vector<16x32xf32>, vector<8x32xf32> -> vector<8x32xf32>
    %c0_10 = arith.constant 0 : index
    %c0_11 = arith.constant 0 : index
    %9 = vector.load %arg7[%c0_10, %c0_11] : memref<1x32xf32, #tpu.memory_space<vmem>>, vector<1x32xf32>
    %10 = vector.broadcast %9 : vector<1x32xf32> to vector<8x32xf32>
    %11 = arith.addf %8, %10 : vector<8x32xf32>
    %cst_12 = arith.constant 0.000000e+00 : f32
    %12 = vector.broadcast %cst_12 : f32 to vector<8x32xf32>
    %13 = arith.maximumf %5, %12 : vector<8x32xf32>
    %cst_13 = arith.constant 0.000000e+00 : f32
    %14 = vector.broadcast %cst_13 : f32 to vector<8x32xf32>
    %15 = arith.maximumf %11, %14 : vector<8x32xf32>
    %16 = tpu.iota {dimensions = array<i32: 1>} : vector<8x16xi32>
    %c0_14 = arith.constant 0 : index
    %c0_15 = arith.constant 0 : index
    %17 = vector.load %arg3[%c0_14, %c0_15] : memref<8x1xi32, #tpu.memory_space<vmem>>, vector<8x1xi32>
    %18 = vector.broadcast %17 : vector<8x1xi32> to vector<8x16xi32>
    %19 = arith.cmpi eq, %18, %16 : vector<8x16xi32>
    %20 = arith.extui %19 : vector<8x16xi1> to vector<8x16xi32>
    %21 = arith.sitofp %20 : vector<8x16xi32> to vector<8x16xf32>
    %c0_16 = arith.constant 0 : index
    %c0_17 = arith.constant 0 : index
    %22 = vector.load %arg8[%c0_16, %c0_17] : memref<32x64xf32, #tpu.memory_space<vmem>>, vector<32x64xf32>
    %cst_18 = arith.constant dense<0.000000e+00> : vector<8x64xf32>
    %23 = tpu.matmul %13, %22, %cst_18 {dimension_numbers = #tpu.dot_dimension_numbers<[1], [0], [0], [1], [0, 0, 1, 1], [], []>} : vector<8x32xf32>, vector<32x64xf32>, vector<8x64xf32> -> vector<8x64xf32>
    %c0_19 = arith.constant 0 : index
    %c0_20 = arith.constant 0 : index
    %24 = vector.load %arg9[%c0_19, %c0_20] : memref<32x64xf32, #tpu.memory_space<vmem>>, vector<32x64xf32>
    %cst_21 = arith.constant dense<0.000000e+00> : vector<8x64xf32>
    %25 = tpu.matmul %15, %24, %cst_21 {dimension_numbers = #tpu.dot_dimension_numbers<[1], [0], [0], [1], [0, 0, 1, 1], [], []>} : vector<8x32xf32>, vector<32x64xf32>, vector<8x64xf32> -> vector<8x64xf32>
    %26 = arith.addf %23, %25 : vector<8x64xf32>
    %c0_22 = arith.constant 0 : index
    %c0_23 = arith.constant 0 : index
    %27 = vector.load %arg10[%c0_22, %c0_23] : memref<16x64xf32, #tpu.memory_space<vmem>>, vector<16x64xf32>
    %cst_24 = arith.constant dense<0.000000e+00> : vector<8x64xf32>
    %28 = tpu.matmul %21, %27, %cst_24 {dimension_numbers = #tpu.dot_dimension_numbers<[1], [0], [0], [1], [0, 0, 1, 1], [], []>} : vector<8x16xf32>, vector<16x64xf32>, vector<8x64xf32> -> vector<8x64xf32>
    %29 = arith.addf %26, %28 : vector<8x64xf32>
    %c0_25 = arith.constant 0 : index
    %c0_26 = arith.constant 0 : index
    %30 = vector.load %arg11[%c0_25, %c0_26] : memref<1x64xf32, #tpu.memory_space<vmem>>, vector<1x64xf32>
    %31 = vector.broadcast %30 : vector<1x64xf32> to vector<8x64xf32>
    %32 = arith.addf %29, %31 : vector<8x64xf32>
    %cst_27 = arith.constant 0.000000e+00 : f32
    %33 = vector.broadcast %cst_27 : f32 to vector<8x64xf32>
    %34 = arith.maximumf %32, %33 : vector<8x64xf32>
    %c0_28 = arith.constant 0 : index
    %c0_29 = arith.constant 0 : index
    %35 = vector.load %arg12[%c0_28, %c0_29] : memref<64x16xf32, #tpu.memory_space<vmem>>, vector<64x16xf32>
    %cst_30 = arith.constant dense<0.000000e+00> : vector<8x16xf32>
    %36 = tpu.matmul %34, %35, %cst_30 {dimension_numbers = #tpu.dot_dimension_numbers<[1], [0], [0], [1], [0, 0, 1, 1], [], []>} : vector<8x64xf32>, vector<64x16xf32>, vector<8x16xf32> -> vector<8x16xf32>
    %c0_31 = arith.constant 0 : index
    %c0_32 = arith.constant 0 : index
    %37 = vector.load %arg13[%c0_31, %c0_32] : memref<1x16xf32, #tpu.memory_space<vmem>>, vector<1x16xf32>
    %38 = vector.broadcast %37 : vector<1x16xf32> to vector<8x16xf32>
    %39 = arith.addf %36, %38 : vector<8x16xf32>
    %c0_33 = arith.constant 0 : index
    %c0_34 = arith.constant 0 : index
    %40 = vector.load %arg14[%c0_33, %c0_34] : memref<8x16xf32, #tpu.memory_space<vmem>>, vector<8x16xf32>
    tpu.vector_store %arg14[%c0_33, %c0_34], %39 {strides = array<i32>} : memref<8x16xf32, #tpu.memory_space<vmem>>, vector<8x16xf32>,
    return
  }
  func.func @transform_0(%arg0: i32) -> (i32, i32) {
    %c0_i32 = arith.constant 0 : i32
    %c0_i32_0 = arith.constant 0 : i32
    return %arg0, %c0_i32 : i32, i32
  }
  func.func @transform_1(%arg0: i32) -> (i32, i32) {
    %c0_i32 = arith.constant 0 : i32
    %c0_i32_0 = arith.constant 0 : i32
    return %arg0, %c0_i32 : i32, i32
  }
  func.func @transform_2(%arg0: i32) -> (i32, i32) {
    %c0_i32 = arith.constant 0 : i32
    %c0_i32_0 = arith.constant 0 : i32
    return %arg0, %c0_i32 : i32, i32
  }
  func.func @transform_3(%arg0: i32) -> (i32, i32) {
    %c0_i32 = arith.constant 0 : i32
    %c0_i32_0 = arith.constant 0 : i32
    %c0_i32_1 = arith.constant 0 : i32
    return %c0_i32, %c0_i32_0 : i32, i32
  }
  func.func @transform_4(%arg0: i32) -> (i32, i32) {
    %c0_i32 = arith.constant 0 : i32
    %c0_i32_0 = arith.constant 0 : i32
    %c0_i32_1 = arith.constant 0 : i32
    return %c0_i32, %c0_i32_0 : i32, i32
  }
  func.func @transform_5(%arg0: i32) -> (i32, i32) {
    %c0_i32 = arith.constant 0 : i32
    %c0_i32_0 = arith.constant 0 : i32
    %c0_i32_1 = arith.constant 0 : i32
    return %c0_i32, %c0_i32_0 : i32, i32
  }
  func.func @transform_6(%arg0: i32) -> (i32, i32) {
    %c0_i32 = arith.constant 0 : i32
    %c0_i32_0 = arith.constant 0 : i32
    %c0_i32_1 = arith.constant 0 : i32
    return %c0_i32, %c0_i32_0 : i32, i32
  }
  func.func @transform_7(%arg0: i32) -> (i32, i32) {
    %c0_i32 = arith.constant 0 : i32
    %c0_i32_0 = arith.constant 0 : i32
    %c0_i32_1 = arith.constant 0 : i32
    return %c0_i32, %c0_i32_0 : i32, i32
  }
  func.func @transform_8(%arg0: i32) -> (i32, i32) {
    %c0_i32 = arith.constant 0 : i32
    %c0_i32_0 = arith.constant 0 : i32
    %c0_i32_1 = arith.constant 0 : i32
    return %c0_i32, %c0_i32_0 : i32, i32
  }
  func.func @transform_9(%arg0: i32) -> (i32, i32) {
    %c0_i32 = arith.constant 0 : i32
    %c0_i32_0 = arith.constant 0 : i32
    %c0_i32_1 = arith.constant 0 : i32
    return %c0_i32, %c0_i32_0 : i32, i32
  }
  func.func @transform_10(%arg0: i32) -> (i32, i32) {
    %c0_i32 = arith.constant 0 : i32
    %c0_i32_0 = arith.constant 0 : i32
    %c0_i32_1 = arith.constant 0 : i32
    return %c0_i32, %c0_i32_0 : i32, i32
  }
  func.func @transform_11(%arg0: i32) -> (i32, i32) {
    %c0_i32 = arith.constant 0 : i32
    %c0_i32_0 = arith.constant 0 : i32
    %c0_i32_1 = arith.constant 0 : i32
    return %c0_i32, %c0_i32_0 : i32, i32
  }
  func.func @transform_12(%arg0: i32) -> (i32, i32) {
    %c0_i32 = arith.constant 0 : i32
    %c0_i32_0 = arith.constant 0 : i32
    %c0_i32_1 = arith.constant 0 : i32
    return %c0_i32, %c0_i32_0 : i32, i32
  }
  func.func @transform_13(%arg0: i32) -> (i32, i32) {
    %c0_i32 = arith.constant 0 : i32
    %c0_i32_0 = arith.constant 0 : i32
    return %arg0, %c0_i32 : i32, i32
  }
}

</mosaic_0001>

<llo_original>
// kernel: tpu_custom_call.1
$region0: #{tpu_custom_call.1}
  #allocation0 [shape = 'u32[]', space=smem, size = 0x4, offset = 0x4, fixed_abs, tag = 'smem constant byte address 0x4 - core index']
  #allocation1 [shape = 'u32[144,128]{1,0:T(1,128)}', space=vmem, size = 0x12000, scoped, tag = 'internal scratch']
  %s0 = inlined_call_operand.hbm [shape: f32[8,16], index: 0, kind: input, shape index: {}]
  %s1 = inlined_call_operand.hbm [shape: f32[8,16], index: 1, kind: input, shape index: {}]
  %s2 = inlined_call_operand.vmem [shape: s32[8,1], index: 2, kind: input, shape index: {}]
  %s3 = inlined_call_operand.vmem [shape: f32[16,32], index: 3, kind: input, shape index: {}]
  %s4 = inlined_call_operand.vmem [shape: f32[1,32], index: 4, kind: input, shape index: {}]
  %s5 = inlined_call_operand.hbm [shape: f32[16,32], index: 5, kind: input, shape index: {}]
  %s6 = inlined_call_operand.vmem [shape: f32[1,32], index: 6, kind: input, shape index: {}]
  %s7 = inlined_call_operand.vmem [shape: f32[32,64], index: 7, kind: input, shape index: {}]
  %s8 = inlined_call_operand.vmem [shape: f32[32,64], index: 8, kind: input, shape index: {}]
  %s9 = inlined_call_operand.vmem [shape: f32[16,64], index: 9, kind: input, shape index: {}]
  %s10 = inlined_call_operand.vmem [shape: f32[1,64], index: 10, kind: input, shape index: {}]
  %s11 = inlined_call_operand.vmem [shape: f32[64,16], index: 11, kind: input, shape index: {}]
  %s12 = inlined_call_operand.vmem [shape: f32[1,16], index: 12, kind: input, shape index: {}]
  %s13 = inlined_call_operand.hbm [shape: f32[8,16], index: 13, kind: output, shape index: {}]
  %s14 = sld [smem:[#allocation0]]
  $region74: #{tpu_custom_call.1} parent=0
    _
  %s16 = ssub.s32 1, %s14
  %s17 = scalar_select 0, %s16, %s14
  $region1: #{tpu_custom_call.1} parent=0
    #allocation2 [shape = 'u8[4096]{0}', space=vmem, size = 0x1000, scoped, tag = 'input window, operand 0, single buffered']
    #allocation3 [shape = 's32[1]{0}', space=sflag, size = 0x4, scoped, tag = 'scoped memory for tpu_custom_call.1']
    #allocation4 [shape = 's32[1]{0}', space=sflag, size = 0x4, scoped, tag = 'scoped memory for tpu_custom_call.1']
    #allocation5 [shape = 'u8[4096]{0}', space=vmem, size = 0x1000, scoped, tag = 'input window, operand 1, single buffered']
    #allocation6 [shape = 's32[1]{0}', space=sflag, size = 0x4, scoped, tag = 'scoped memory for tpu_custom_call.1']
    #allocation7 [shape = 'u8[8192]{0}', space=vmem, size = 0x2000, scoped, tag = 'input window, operand 5, single buffered']
    #allocation8 [shape = 'u8[4096]{0}', space=vmem, size = 0x1000, scoped, tag = 'output window, operand 0, single buffered']
    %18 = vsyncpa [#allocation3], 0
    %19 = vsyncpa [#allocation6], 0
    %20 = vsyncpa [#allocation4], 0
    // Predicated region
    $region2: #{tpu_custom_call.1} parent=1 // pred_check
      _
    $region3: #{tpu_custom_call.1} parent=1 // pred_check_branch
      %22 = sbr.rel (0) target = $region5
    $region4: #{tpu_custom_call.1} parent=1 // pred_region
      %s24 = ssub.s32 128, 128
      %25 = vsyncadd [#allocation3], %s24
      %s27 = sshll.u32 [#allocation2], 4
      %s28 = int_to_ptr.vmem [resolvable:$true] %s27
      %30 = dma.hbm_to_vmem [thread:$0]  %s0, 128, %s28, [#allocation3]
    $region5: #{tpu_custom_call.1} parent=1 // pred_fallthru
      _
    // Predicated region
    $region6: #{tpu_custom_call.1} parent=1 // pred_check
      _
    $region7: #{tpu_custom_call.1} parent=1 // pred_check_branch
      %32 = sbr.rel (0) target = $region9
    $region8: #{tpu_custom_call.1} parent=1 // pred_region
      %s34 = ssub.s32 128, 128
      %35 = vsyncadd [#allocation6], %s34
      %s37 = sshll.u32 [#allocation5], 4
      %s38 = int_to_ptr.vmem [resolvable:$true] %s37
      %40 = dma.hbm_to_vmem [thread:$0]  %s1, 128, %s38, [#allocation6]
    $region9: #{tpu_custom_call.1} parent=1 // pred_fallthru
      _
    // Predicated region
    $region10: #{tpu_custom_call.1} parent=1 // pred_check
      _
    $region11: #{tpu_custom_call.1} parent=1 // pred_check_branch
      %42 = sbr.rel (0) target = $region13
    $region12: #{tpu_custom_call.1} parent=1 // pred_region
      _
    $region13: #{tpu_custom_call.1} parent=1 // pred_fallthru
      _
    // Predicated region
    $region14: #{tpu_custom_call.1} parent=1 // pred_check
      _
    $region15: #{tpu_custom_call.1} parent=1 // pred_check_branch
      %44 = sbr.rel (0) target = $region17
    $region16: #{tpu_custom_call.1} parent=1 // pred_region
      _
    $region17: #{tpu_custom_call.1} parent=1 // pred_fallthru
      _
    // Predicated region
    $region18: #{tpu_custom_call.1} parent=1 // pred_check
      _
    $region19: #{tpu_custom_call.1} parent=1 // pred_check_branch
      %46 = sbr.rel (0) target = $region21
    $region20: #{tpu_custom_call.1} parent=1 // pred_region
      _
    $region21: #{tpu_custom_call.1} parent=1 // pred_fallthru
      _
    // Predicated region
    $region22: #{tpu_custom_call.1} parent=1 // pred_check
      _
    $region23: #{tpu_custom_call.1} parent=1 // pred_check_branch
      %48 = sbr.rel (0) target = $region25
    $region24: #{tpu_custom_call.1} parent=1 // pred_region
      %s50 = ssub.s32 256, 256
      %51 = vsyncadd [#allocation6], %s50
      %s52 = sshll.u32 [#allocation7], 4
      %s53 = int_to_ptr.vmem [resolvable:$true] %s52
      %58 = dma.hbm_to_vmem [thread:$0]  %s5, 256, %s53, [#allocation6], 128, 128, 8
    $region25: #{tpu_custom_call.1} parent=1 // pred_fallthru
      _
    // Predicated region
    $region26: #{tpu_custom_call.1} parent=1 // pred_check
      _
    $region27: #{tpu_custom_call.1} parent=1 // pred_check_branch
      %60 = sbr.rel (0) target = $region29
    $region28: #{tpu_custom_call.1} parent=1 // pred_region
      _
    $region29: #{tpu_custom_call.1} parent=1 // pred_fallthru
      _
    // Predicated region
    $region30: #{tpu_custom_call.1} parent=1 // pred_check
      _
    $region31: #{tpu_custom_call.1} parent=1 // pred_check_branch
      %62 = sbr.rel (0) target = $region33
    $region32: #{tpu_custom_call.1} parent=1 // pred_region
      _
    $region33: #{tpu_custom_call.1} parent=1 // pred_fallthru
      _
    // Predicated region
    $region34: #{tpu_custom_call.1} parent=1 // pred_check
      _
    $region35: #{tpu_custom_call.1} parent=1 // pred_check_branch
      %64 = sbr.rel (0) target = $region37
    $region36: #{tpu_custom_call.1} parent=1 // pred_region
      _
    $region37: #{tpu_custom_call.1} parent=1 // pred_fallthru
      _
    // Predicated region
    $region38: #{tpu_custom_call.1} parent=1 // pred_check
      _
    $region39: #{tpu_custom_call.1} parent=1 // pred_check_branch
      %66 = sbr.rel (0) target = $region41
    $region40: #{tpu_custom_call.1} parent=1 // pred_region
      _
    $region41: #{tpu_custom_call.1} parent=1 // pred_fallthru
      _
    // Predicated region
    $region42: #{tpu_custom_call.1} parent=1 // pred_check
      _
    $region43: #{tpu_custom_call.1} parent=1 // pred_check_branch
      %68 = sbr.rel (0) target = $region45
    $region44: #{tpu_custom_call.1} parent=1 // pred_region
      _
    $region45: #{tpu_custom_call.1} parent=1 // pred_fallthru
      _
    // Predicated region
    $region46: #{tpu_custom_call.1} parent=1 // pred_check
      _
    $region47: #{tpu_custom_call.1} parent=1 // pred_check_branch
      %70 = sbr.rel (0) target = $region49
    $region48: #{tpu_custom_call.1} parent=1 // pred_region
      _
    $region49: #{tpu_custom_call.1} parent=1 // pred_fallthru
      _
    // Predicated region
    $region50: #{tpu_custom_call.1} parent=1 // pred_check
      _
    $region51: #{tpu_custom_call.1} parent=1 // pred_check_branch
      %72 = sbr.rel (0) target = $region53
    $region52: #{tpu_custom_call.1} parent=1 // pred_region
      _
    $region53: #{tpu_custom_call.1} parent=1 // pred_fallthru
      _
    // Predicated region
    $region54: #{tpu_custom_call.1} parent=1 // pred_check
      _
    $region55: #{tpu_custom_call.1} parent=1 // pred_check_branch
      %74 = sbr.rel (0) target = $region57
    $region56: #{tpu_custom_call.1} parent=1 // pred_region
      %75 = dma.done [#allocation3], 128
    $region57: #{tpu_custom_call.1} parent=1 // pred_fallthru
      _
    // Predicated region
    $region58: #{tpu_custom_call.1} parent=1 // pred_check
      _
    $region59: #{tpu_custom_call.1} parent=1 // pred_check_branch
      %77 = sbr.rel (0) target = $region61
    $region60: #{tpu_custom_call.1} parent=1 // pred_region
      %78 = dma.done [#allocation6], 128
    $region61: #{tpu_custom_call.1} parent=1 // pred_fallthru
      _
    // Predicated region
    $region62: #{tpu_custom_call.1} parent=1 // pred_check
      _
    $region63: #{tpu_custom_call.1} parent=1 // pred_check_branch
      %80 = sbr.rel (0) target = $region65
    $region64: #{tpu_custom_call.1} parent=1 // pred_region
      %81 = dma.done [#allocation6], 256
    $region65: #{tpu_custom_call.1} parent=1 // pred_fallthru
      _
    %v82 = vld [vmem:[#allocation2] sm:$0xff]
    %v83 = vld [vmem:[%s3] sm:$0xff]
    %v84 = vld [vmem:[%s3 + $0x8] sm:$0xff]
    %v85 = vld [vmem:[%s4] sm:$0x1]
    %v87 = vlaneseq
    %v88 = vshrl.u32 %v87, 7
    %v89 = vsub.s32 0, %v88
    %v90 = vrot.slane %v85, %v89
    %vm92 = vcmask 130048
    %v94 = vsel %vm92, %v82, 0
    %96 = vmatprep.subr.mxu0 0.0
    %97 = vmatpush1.msra.mxu0 %v83
    %98 = vmatprep.subr.mxu0 0.0
    %99 = vmatpush1.msra.mxu0 %v84
    %100 = vmatprep.subr.mxu0 0.0
    %101 = vmatpush1.msra.mxu0 0.0
    %102 = vmatprep.subr.mxu0 0.0
    %103 = vmatpush1.msra.mxu0 0.0
    %104 = vmatprep.subr.mxu0 0.0
    %105 = vmatpush1.msra.mxu0 0.0
    %106 = vmatprep.subr.mxu0 0.0
    %107 = vmatpush1.msra.mxu0 0.0
    %108 = vmatprep.subr.mxu0 0.0
    %109 = vmatpush1.msra.mxu0 0.0
    %110 = vmatprep.subr.mxu0 0.0
    %111 = vmatpush1.msra.mxu0 0.0
    %112 = vmatprep.subr.mxu0 0.0
    %113 = vmatpush1.msra.mxu0 0.0
    %114 = vmatprep.subr.mxu0 0.0
    %115 = vmatpush1.msra.mxu0 0.0
    %116 = vmatprep.subr.mxu0 0.0
    %117 = vmatpush1.msra.mxu0 0.0
    %118 = vmatprep.subr.mxu0 0.0
    %119 = vmatpush1.msra.mxu0 0.0
    %120 = vmatprep.subr.mxu0 0.0
    %121 = vmatpush1.msra.mxu0 0.0
    %122 = vmatprep.subr.mxu0 0.0
    %123 = vmatpush1.msra.mxu0 0.0
    %124 = vmatprep.subr.mxu0 0.0
    %125 = vmatpush1.msra.mxu0 0.0
    %126 = vmatprep.subr.mxu0 0.0
    %127 = vmatpush1.msra.mxu0 0.0
    %128 = vmatprep.subr.mxu0 0.0
    %129 = vmatpush1.msra.mxu0 0.0
    %130 = vmatprep.subr.mxu0 0.0
    %131 = vmatpush1.msra.mxu0 0.0
    %132 = vmatprep.subr.mxu0 0.0
    %133 = vmatpush1.msra.mxu0 0.0
    %134 = vmatprep.subr.mxu0 0.0
    %135 = vmatpush1.msra.mxu0 0.0
    %136 = vmatprep.subr.mxu0 0.0
    %137 = vmatpush1.msra.mxu0 0.0
    %138 = vmatprep.subr.mxu0 0.0
    %139 = vmatpush1.msra.mxu0 0.0
    %140 = vmatprep.subr.mxu0 0.0
    %141 = vmatpush1.msra.mxu0 0.0
    %142 = vmatprep.subr.mxu0 0.0
    %143 = vmatpush1.msra.mxu0 0.0
    %144 = vmatprep.subr.mxu0 0.0
    %145 = vmatpush1.msra.mxu0 0.0
    %146 = vmatprep.subr.mxu0 0.0
    %147 = vmatpush1.msra.mxu0 0.0
    %148 = vmatprep.subr.mxu0 0.0
    %149 = vmatpush1.msra.mxu0 0.0
    %150 = vmatprep.subr.mxu0 0.0
    %151 = vmatpush1.msra.mxu0 0.0
    %152 = vmatprep.subr.mxu0 0.0
    %153 = vmatpush1.msra.mxu0 0.0
    %154 = vmatprep.subr.mxu0 0.0
    %155 = vmatpush1.msra.mxu0 0.0
    %156 = vmatprep.subr.mxu0 0.0
    %157 = vmatpush1.msra.mxu0 0.0
    %158 = vmatprep.subr.mxu0 0.0
    %159 = vmatpush1.msra.mxu0 0.0
    %160 = vmatprep.mubr.f32.mxu0 0.0
    %161 = vmatmul.mubr.f32.gmra.mrb[0].mxu0 %v94
    %v162 = vpop.f32.mrb[0].mxu0
    %v163 = vadd.f32 %v90, %v162
    %v164 = vpop.f32.mrb[0].mxu0
    %165 = vdwg.mxu0
    %v166 = vld [vmem:[#allocation5] sm:$0xff]
    %v167 = vld [vmem:[#allocation7] sm:$0xff]
    %v168 = vld [vmem:[#allocation7 + $0x8] sm:$0xff]
    %v169 = vld [vmem:[%s6] sm:$0x1]
    %v171 = vlaneseq
    %v172 = vshrl.u32 %v171, 7
    %v173 = vsub.s32 0, %v172
    %v174 = vrot.slane %v169, %v173
    %v177 = vsel %vm92, %v166, 0
    %179 = vmatprep.subr.mxu0 0.0
    %180 = vmatpush1.msra.mxu0 %v167
    %181 = vmatprep.subr.mxu0 0.0
    %182 = vmatpush1.msra.mxu0 %v168
    %183 = vmatprep.subr.mxu0 0.0
    %184 = vmatpush1.msra.mxu0 0.0
    %185 = vmatprep.subr.mxu0 0.0
    %186 = vmatpush1.msra.mxu0 0.0
    %187 = vmatprep.subr.mxu0 0.0
    %188 = vmatpush1.msra.mxu0 0.0
    %189 = vmatprep.subr.mxu0 0.0
    %190 = vmatpush1.msra.mxu0 0.0
    %191 = vmatprep.subr.mxu0 0.0
    %192 = vmatpush1.msra.mxu0 0.0
    %193 = vmatprep.subr.mxu0 0.0
    %194 = vmatpush1.msra.mxu0 0.0
    %195 = vmatprep.subr.mxu0 0.0
    %196 = vmatpush1.msra.mxu0 0.0
    %197 = vmatprep.subr.mxu0 0.0
    %198 = vmatpush1.msra.mxu0 0.0
    %199 = vmatprep.subr.mxu0 0.0
    %200 = vmatpush1.msra.mxu0 0.0
    %201 = vmatprep.subr.mxu0 0.0
    %202 = vmatpush1.msra.mxu0 0.0
    %203 = vmatprep.subr.mxu0 0.0
    %204 = vmatpush1.msra.mxu0 0.0
    %205 = vmatprep.subr.mxu0 0.0
    %206 = vmatpush1.msra.mxu0 0.0
    %207 = vmatprep.subr.mxu0 0.0
    %208 = vmatpush1.msra.mxu0 0.0
    %209 = vmatprep.subr.mxu0 0.0
    %210 = vmatpush1.msra.mxu0 0.0
    %211 = vmatprep.subr.mxu0 0.0
    %212 = vmatpush1.msra.mxu0 0.0
    %213 = vmatprep.subr.mxu0 0.0
    %214 = vmatpush1.msra.mxu0 0.0
    %215 = vmatprep.subr.mxu0 0.0
    %216 = vmatpush1.msra.mxu0 0.0
    %217 = vmatprep.subr.mxu0 0.0
    %218 = vmatpush1.msra.mxu0 0.0
    %219 = vmatprep.subr.mxu0 0.0
    %220 = vmatpush1.msra.mxu0 0.0
    %221 = vmatprep.subr.mxu0 0.0
    %222 = vmatpush1.msra.mxu0 0.0
    %223 = vmatprep.subr.mxu0 0.0
    %224 = vmatpush1.msra.mxu0 0.0
    %225 = vmatprep.subr.mxu0 0.0
    %226 = vmatpush1.msra.mxu0 0.0
    %227 = vmatprep.subr.mxu0 0.0
    %228 = vmatpush1.msra.mxu0 0.0
    %229 = vmatprep.subr.mxu0 0.0
    %230 = vmatpush1.msra.mxu0 0.0
    %231 = vmatprep.subr.mxu0 0.0
    %232 = vmatpush1.msra.mxu0 0.0
    %233 = vmatprep.subr.mxu0 0.0
    %234 = vmatpush1.msra.mxu0 0.0
    %235 = vmatprep.subr.mxu0 0.0
    %236 = vmatpush1.msra.mxu0 0.0
    %237 = vmatprep.subr.mxu0 0.0
    %238 = vmatpush1.msra.mxu0 0.0
    %239 = vmatprep.subr.mxu0 0.0
    %240 = vmatpush1.msra.mxu0 0.0
    %241 = vmatprep.subr.mxu0 0.0
    %242 = vmatpush1.msra.mxu0 0.0
    %243 = vmatprep.mubr.f32.mxu0 0.0
    %244 = vmatmul.mubr.f32.gmra.mrb[0].mxu0 %v177
    %v245 = vpop.f32.mrb[0].mxu0
    %v246 = vadd.f32 %v174, %v245
    %v247 = vpop.f32.mrb[0].mxu0
    %248 = vdwg.mxu0
    %v249 = vmax.f32 %v163, 0.0
    %v250 = vmax.f32 %v246, 0.0
    %v251 = vlaneseq
    %v252 = vand.u32 %v251, 127
    %v253 = vld [vmem:[%s2] sm:$0xff]
    %254 = vset.pattern.permute.xlu0 0
    %255 = vperm.xlu0 %254, %v253
    %v256 = vpop.permute.xlu0 %255
    %vm257 = vcmp.eq.s32.totalorder %v256, %v252
    %v258 = vsel %vm257, 1, 0
    %v259 = vcvt.s32.f32 %v258
    %v260 = vld [vmem:[%s7] sm:$0xff]
    %v261 = vld [vmem:[%s7 + $0x8] sm:$0xff]
    %v262 = vld [vmem:[%s7 + $0x10] sm:$0xff]
    %v263 = vld [vmem:[%s7 + $0x18] sm:$0xff]
    %v264 = vld [vmem:[%s8] sm:$0xff]
    %v265 = vld [vmem:[%s8 + $0x8] sm:$0xff]
    %v266 = vld [vmem:[%s8 + $0x10] sm:$0xff]
    %v267 = vld [vmem:[%s8 + $0x18] sm:$0xff]
    %vm268 = vcmask 261120
    %v270 = vsel %vm268, %v250, 0
    %272 = vmatprep.subr.mxu0 0.0
    %273 = vmatpush1.msra.mxu0 %v264
    %274 = vmatprep.subr.mxu0 0.0
    %275 = vmatpush1.msra.mxu0 %v265
    %276 = vmatprep.subr.mxu0 0.0
    %277 = vmatpush1.msra.mxu0 %v266
    %278 = vmatprep.subr.mxu0 0.0
    %279 = vmatpush1.msra.mxu0 %v267
    %280 = vmatprep.subr.mxu0 0.0
    %281 = vmatpush1.msra.mxu0 0.0
    %282 = vmatprep.subr.mxu0 0.0
    %283 = vmatpush1.msra.mxu0 0.0
    %284 = vmatprep.subr.mxu0 0.0
    %285 = vmatpush1.msra.mxu0 0.0
    %286 = vmatprep.subr.mxu0 0.0
    %287 = vmatpush1.msra.mxu0 0.0
    %288 = vmatprep.subr.mxu0 0.0
    %289 = vmatpush1.msra.mxu0 0.0
    %290 = vmatprep.subr.mxu0 0.0
    %291 = vmatpush1.msra.mxu0 0.0
    %292 = vmatprep.subr.mxu0 0.0
    %293 = vmatpush1.msra.mxu0 0.0
    %294 = vmatprep.subr.mxu0 0.0
    %295 = vmatpush1.msra.mxu0 0.0
    %296 = vmatprep.subr.mxu0 0.0
    %297 = vmatpush1.msra.mxu0 0.0
    %298 = vmatprep.subr.mxu0 0.0
    %299 = vmatpush1.msra.mxu0 0.0
    %300 = vmatprep.subr.mxu0 0.0
    %301 = vmatpush1.msra.mxu0 0.0
    %302 = vmatprep.subr.mxu0 0.0
    %303 = vmatpush1.msra.mxu0 0.0
    %304 = vmatprep.subr.mxu0 0.0
    %305 = vmatpush1.msra.mxu0 0.0
    %306 = vmatprep.subr.mxu0 0.0
    %307 = vmatpush1.msra.mxu0 0.0
    %308 = vmatprep.subr.mxu0 0.0
    %309 = vmatpush1.msra.mxu0 0.0
    %310 = vmatprep.subr.mxu0 0.0
    %311 = vmatpush1.msra.mxu0 0.0
    %312 = vmatprep.subr.mxu0 0.0
    %313 = vmatpush1.msra.mxu0 0.0
    %314 = vmatprep.subr.mxu0 0.0
    %315 = vmatpush1.msra.mxu0 0.0
    %316 = vmatprep.subr.mxu0 0.0
    %317 = vmatpush1.msra.mxu0 0.0
    %318 = vmatprep.subr.mxu0 0.0
    %319 = vmatpush1.msra.mxu0 0.0
    %320 = vmatprep.subr.mxu0 0.0
    %321 = vmatpush1.msra.mxu0 0.0
    %322 = vmatprep.subr.mxu0 0.0
    %323 = vmatpush1.msra.mxu0 0.0
    %324 = vmatprep.subr.mxu0 0.0
    %325 = vmatpush1.msra.mxu0 0.0
    %326 = vmatprep.subr.mxu0 0.0
    %327 = vmatpush1.msra.mxu0 0.0
    %328 = vmatprep.subr.mxu0 0.0
    %329 = vmatpush1.msra.mxu0 0.0
    %330 = vmatprep.subr.mxu0 0.0
    %331 = vmatpush1.msra.mxu0 0.0
    %332 = vmatprep.subr.mxu0 0.0
    %333 = vmatpush1.msra.mxu0 0.0
    %334 = vmatprep.subr.mxu0 0.0
    %335 = vmatpush1.msra.mxu0 0.0
    %336 = vmatprep.mubr.f32.mxu0 0.0
    %337 = vmatmul.mubr.f32.gmra.mrb[0].mxu0 %v270
    %v338 = vpop.f32.mrb[0].mxu0
    %v339 = vadd.f32 0.0, %v338
    %v340 = vpop.f32.mrb[0].mxu0
    %341 = vdwg.mxu0
    %v343 = vsel %vm268, %v249, 0
    %345 = vmatprep.subr.mxu0 0.0
    %346 = vmatpush1.msra.mxu0 %v260
    %347 = vmatprep.subr.mxu0 0.0
    %348 = vmatpush1.msra.mxu0 %v261
    %349 = vmatprep.subr.mxu0 0.0
    %350 = vmatpush1.msra.mxu0 %v262
    %351 = vmatprep.subr.mxu0 0.0
    %352 = vmatpush1.msra.mxu0 %v263
    %353 = vmatprep.subr.mxu0 0.0
    %354 = vmatpush1.msra.mxu0 0.0
    %355 = vmatprep.subr.mxu0 0.0
    %356 = vmatpush1.msra.mxu0 0.0
    %357 = vmatprep.subr.mxu0 0.0
    %358 = vmatpush1.msra.mxu0 0.0
    %359 = vmatprep.subr.mxu0 0.0
    %360 = vmatpush1.msra.mxu0 0.0
    %361 = vmatprep.subr.mxu0 0.0
    %362 = vmatpush1.msra.mxu0 0.0
    %363 = vmatprep.subr.mxu0 0.0
    %364 = vmatpush1.msra.mxu0 0.0
    %365 = vmatprep.subr.mxu0 0.0
    %366 = vmatpush1.msra.mxu0 0.0
    %367 = vmatprep.subr.mxu0 0.0
    %368 = vmatpush1.msra.mxu0 0.0
    %369 = vmatprep.subr.mxu0 0.0
    %370 = vmatpush1.msra.mxu0 0.0
    %371 = vmatprep.subr.mxu0 0.0
    %372 = vmatpush1.msra.mxu0 0.0
    %373 = vmatprep.subr.mxu0 0.0
    %374 = vmatpush1.msra.mxu0 0.0
    %375 = vmatprep.subr.mxu0 0.0
    %376 = vmatpush1.msra.mxu0 0.0
    %377 = vmatprep.subr.mxu0 0.0
    %378 = vmatpush1.msra.mxu0 0.0
    %379 = vmatprep.subr.mxu0 0.0
    %380 = vmatpush1.msra.mxu0 0.0
    %381 = vmatprep.subr.mxu0 0.0
    %382 = vmatpush1.msra.mxu0 0.0
    %383 = vmatprep.subr.mxu0 0.0
    %384 = vmatpush1.msra.mxu0 0.0
    %385 = vmatprep.subr.mxu0 0.0
    %386 = vmatpush1.msra.mxu0 0.0
    %387 = vmatprep.subr.mxu0 0.0
    %388 = vmatpush1.msra.mxu0 0.0
    %389 = vmatprep.subr.mxu0 0.0
    %390 = vmatpush1.msra.mxu0 0.0
    %391 = vmatprep.subr.mxu0 0.0
    %392 = vmatpush1.msra.mxu0 0.0
    %393 = vmatprep.subr.mxu0 0.0
    %394 = vmatpush1.msra.mxu0 0.0
    %395 = vmatprep.subr.mxu0 0.0
    %396 = vmatpush1.msra.mxu0 0.0
    %397 = vmatprep.subr.mxu0 0.0
    %398 = vmatpush1.msra.mxu0 0.0
    %399 = vmatprep.subr.mxu0 0.0
    %400 = vmatpush1.msra.mxu0 0.0
    %401 = vmatprep.subr.mxu0 0.0
    %402 = vmatpush1.msra.mxu0 0.0
    %403 = vmatprep.subr.mxu0 0.0
    %404 = vmatpush1.msra.mxu0 0.0
    %405 = vmatprep.subr.mxu0 0.0
    %406 = vmatpush1.msra.mxu0 0.0
    %407 = vmatprep.subr.mxu0 0.0
    %408 = vmatpush1.msra.mxu0 0.0
    %409 = vmatprep.mubr.f32.mxu0 0.0
    %410 = vmatmul.mubr.f32.gmra.mrb[0].mxu0 %v343
    %v411 = vpop.f32.mrb[0].mxu0
    %v412 = vadd.f32 %v339, %v411
    %v413 = vpop.f32.mrb[0].mxu0
    %414 = vdwg.mxu0
    %v415 = vld [vmem:[%s9] sm:$0xff]
    %v416 = vld [vmem:[%s9 + $0x8] sm:$0xff]
    %v418 = vsel %vm92, %v259, 0
    %420 = vmatprep.subr.mxu0 0.0
    %421 = vmatpush1.msra.mxu0 %v415
    %422 = vmatprep.subr.mxu0 0.0
    %423 = vmatpush1.msra.mxu0 %v416
    %424 = vmatprep.subr.mxu0 0.0
    %425 = vmatpush1.msra.mxu0 0.0
    %426 = vmatprep.subr.mxu0 0.0
    %427 = vmatpush1.msra.mxu0 0.0
    %428 = vmatprep.subr.mxu0 0.0
    %429 = vmatpush1.msra.mxu0 0.0
    %430 = vmatprep.subr.mxu0 0.0
    %431 = vmatpush1.msra.mxu0 0.0
    %432 = vmatprep.subr.mxu0 0.0
    %433 = vmatpush1.msra.mxu0 0.0
    %434 = vmatprep.subr.mxu0 0.0
    %435 = vmatpush1.msra.mxu0 0.0
    %436 = vmatprep.subr.mxu0 0.0
    %437 = vmatpush1.msra.mxu0 0.0
    %438 = vmatprep.subr.mxu0 0.0
    %439 = vmatpush1.msra.mxu0 0.0
    %440 = vmatprep.subr.mxu0 0.0
    %441 = vmatpush1.msra.mxu0 0.0
    %442 = vmatprep.subr.mxu0 0.0
    %443 = vmatpush1.msra.mxu0 0.0
    %444 = vmatprep.subr.mxu0 0.0
    %445 = vmatpush1.msra.mxu0 0.0
    %446 = vmatprep.subr.mxu0 0.0
    %447 = vmatpush1.msra.mxu0 0.0
    %448 = vmatprep.subr.mxu0 0.0
    %449 = vmatpush1.msra.mxu0 0.0
    %450 = vmatprep.subr.mxu0 0.0
    %451 = vmatpush1.msra.mxu0 0.0
    %452 = vmatprep.subr.mxu0 0.0
    %453 = vmatpush1.msra.mxu0 0.0
    %454 = vmatprep.subr.mxu0 0.0
    %455 = vmatpush1.msra.mxu0 0.0
    %456 = vmatprep.subr.mxu0 0.0
    %457 = vmatpush1.msra.mxu0 0.0
    %458 = vmatprep.subr.mxu0 0.0
    %459 = vmatpush1.msra.mxu0 0.0
    %460 = vmatprep.subr.mxu0 0.0
    %461 = vmatpush1.msra.mxu0 0.0
    %462 = vmatprep.subr.mxu0 0.0
    %463 = vmatpush1.msra.mxu0 0.0
    %464 = vmatprep.subr.mxu0 0.0
    %465 = vmatpush1.msra.mxu0 0.0
    %466 = vmatprep.subr.mxu0 0.0
    %467 = vmatpush1.msra.mxu0 0.0
    %468 = vmatprep.subr.mxu0 0.0
    %469 = vmatpush1.msra.mxu0 0.0
    %470 = vmatprep.subr.mxu0 0.0
    %471 = vmatpush1.msra.mxu0 0.0
    %472 = vmatprep.subr.mxu0 0.0
    %473 = vmatpush1.msra.mxu0 0.0
    %474 = vmatprep.subr.mxu0 0.0
    %475 = vmatpush1.msra.mxu0 0.0
    %476 = vmatprep.subr.mxu0 0.0
    %477 = vmatpush1.msra.mxu0 0.0
    %478 = vmatprep.subr.mxu0 0.0
    %479 = vmatpush1.msra.mxu0 0.0
    %480 = vmatprep.subr.mxu0 0.0
    %481 = vmatpush1.msra.mxu0 0.0
    %482 = vmatprep.subr.mxu0 0.0
    %483 = vmatpush1.msra.mxu0 0.0
    %484 = vmatprep.mubr.f32.mxu0 0.0
    %485 = vmatmul.mubr.f32.gmra.mrb[0].mxu0 %v418
    %v486 = vpop.f32.mrb[0].mxu0
    %v487 = vadd.f32 0.0, %v486
    %v488 = vpop.f32.mrb[0].mxu0
    %489 = vdwg.mxu0
    %v490 = vadd.f32 %v412, %v487
    %v491 = vld [vmem:[%s10] sm:$0x1]
    %v493 = vlaneseq
    %v494 = vshrl.u32 %v493, 7
    %v495 = vsub.s32 0, %v494
    %v496 = vrot.slane %v491, %v495
    %v498 = vadd.f32 %v490, %v496
    %v499 = vmax.f32 %v498, 0.0
    %v500 = vld [vmem:[%s11] sm:$0xff]
    %v501 = vld [vmem:[%s11 + $0x8] sm:$0xff]
    %v502 = vld [vmem:[%s11 + $0x10] sm:$0xff]
    %v503 = vld [vmem:[%s11 + $0x18] sm:$0xff]
    %v504 = vld [vmem:[%s11 + $0x20] sm:$0xff]
    %v505 = vld [vmem:[%s11 + $0x28] sm:$0xff]
    %v506 = vld [vmem:[%s11 + $0x30] sm:$0xff]
    %v507 = vld [vmem:[%s11 + $0x38] sm:$0xff]
    %v508 = vld [vmem:[%s12] sm:$0x1]
    %v510 = vlaneseq
    %v511 = vshrl.u32 %v510, 7
    %v512 = vsub.s32 0, %v511
    %v513 = vrot.slane %v508, %v512
    %vm515 = vcmask 523264
    %v517 = vsel %vm515, %v499, 0
    %519 = vmatprep.subr.mxu0 0.0
    %520 = vmatpush1.msra.mxu0 %v500
    %521 = vmatprep.subr.mxu0 0.0
    %522 = vmatpush1.msra.mxu0 %v501
    %523 = vmatprep.subr.mxu0 0.0
    %524 = vmatpush1.msra.mxu0 %v502
    %525 = vmatprep.subr.mxu0 0.0
    %526 = vmatpush1.msra.mxu0 %v503
    %527 = vmatprep.subr.mxu0 0.0
    %528 = vmatpush1.msra.mxu0 %v504
    %529 = vmatprep.subr.mxu0 0.0
    %530 = vmatpush1.msra.mxu0 %v505
    %531 = vmatprep.subr.mxu0 0.0
    %532 = vmatpush1.msra.mxu0 %v506
    %533 = vmatprep.subr.mxu0 0.0
    %534 = vmatpush1.msra.mxu0 %v507
    %535 = vmatprep.subr.mxu0 0.0
    %536 = vmatpush1.msra.mxu0 0.0
    %537 = vmatprep.subr.mxu0 0.0
    %538 = vmatpush1.msra.mxu0 0.0
    %539 = vmatprep.subr.mxu0 0.0
    %540 = vmatpush1.msra.mxu0 0.0
    %541 = vmatprep.subr.mxu0 0.0
    %542 = vmatpush1.msra.mxu0 0.0
    %543 = vmatprep.subr.mxu0 0.0
    %544 = vmatpush1.msra.mxu0 0.0
    %545 = vmatprep.subr.mxu0 0.0
    %546 = vmatpush1.msra.mxu0 0.0
    %547 = vmatprep.subr.mxu0 0.0
    %548 = vmatpush1.msra.mxu0 0.0
    %549 = vmatprep.subr.mxu0 0.0
    %550 = vmatpush1.msra.mxu0 0.0
    %551 = vmatprep.subr.mxu0 0.0
    %552 = vmatpush1.msra.mxu0 0.0
    %553 = vmatprep.subr.mxu0 0.0
    %554 = vmatpush1.msra.mxu0 0.0
    %555 = vmatprep.subr.mxu0 0.0
    %556 = vmatpush1.msra.mxu0 0.0
    %557 = vmatprep.subr.mxu0 0.0
    %558 = vmatpush1.msra.mxu0 0.0
    %559 = vmatprep.subr.mxu0 0.0
    %560 = vmatpush1.msra.mxu0 0.0
    %561 = vmatprep.subr.mxu0 0.0
    %562 = vmatpush1.msra.mxu0 0.0
    %563 = vmatprep.subr.mxu0 0.0
    %564 = vmatpush1.msra.mxu0 0.0
    %565 = vmatprep.subr.mxu0 0.0
    %566 = vmatpush1.msra.mxu0 0.0
    %567 = vmatprep.subr.mxu0 0.0
    %568 = vmatpush1.msra.mxu0 0.0
    %569 = vmatprep.subr.mxu0 0.0
    %570 = vmatpush1.msra.mxu0 0.0
    %571 = vmatprep.subr.mxu0 0.0
    %572 = vmatpush1.msra.mxu0 0.0
    %573 = vmatprep.subr.mxu0 0.0
    %574 = vmatpush1.msra.mxu0 0.0
    %575 = vmatprep.subr.mxu0 0.0
    %576 = vmatpush1.msra.mxu0 0.0
    %577 = vmatprep.subr.mxu0 0.0
    %578 = vmatpush1.msra.mxu0 0.0
    %579 = vmatprep.subr.mxu0 0.0
    %580 = vmatpush1.msra.mxu0 0.0
    %581 = vmatprep.subr.mxu0 0.0
    %582 = vmatpush1.msra.mxu0 0.0
    %583 = vmatprep.mubr.f32.mxu0 0.0
    %584 = vmatmul.mubr.f32.gmra.mrb[0].mxu0 %v517
    %v585 = vpop.f32.mrb[0].mxu0
    %v586 = vadd.f32 %v513, %v585
    %v587 = vpop.f32.mrb[0].mxu0
    %588 = vdwg.mxu0
    %589 = vst.msk [vmem:[#allocation8] sm:$0xff] %vm92, %v586
    // Predicated region
    $region66: #{tpu_custom_call.1} parent=1 // pred_check
      _
    $region67: #{tpu_custom_call.1} parent=1 // pred_check_branch
      %591 = sbr.rel (0) target = $region69
    $region68: #{tpu_custom_call.1} parent=1 // pred_region
      %s593 = ssub.s32 128, 128
      %594 = vsyncadd [#allocation4], %s593
      %s596 = sshll.u32 [#allocation8], 4
      %s597 = int_to_ptr.vmem [resolvable:$true] %s596
      %599 = dma.vmem_to_hbm [thread:$0]  %s597, 128, %s13, [#allocation4]
    $region69: #{tpu_custom_call.1} parent=1 // pred_fallthru
      _
    // Predicated region
    $region70: #{tpu_custom_call.1} parent=1 // pred_check
      _
    $region71: #{tpu_custom_call.1} parent=1 // pred_check_branch
      %601 = sbr.rel (0) target = $region73
    $region72: #{tpu_custom_call.1} parent=1 // pred_region
      %602 = dma.done [#allocation4], 128
    $region73: #{tpu_custom_call.1} parent=1 // pred_fallthru
      _
    %603 = vsyncpa [#allocation3], 1
    %604 = vsyncpa [#allocation6], 1
    %605 = vsyncpa [#allocation4], 1

</llo_original>
